<compile_context>
chip_gen: v6e
topology: v6e:2x2x1
jax: 0.10.0
libtpu: 0.0.40
codegen_flags: <defaults>
</compile_context>

<pallas_src>
import functools

import jax
import jax.numpy as jnp
from jax.experimental import pallas as pl
from jax.experimental.pallas import tpu as pltpu


NEG_SLOPE = 0.01                       # PyTorch nn.LeakyReLU default
_FUSED_VMEM_BUDGET = 36 * 1024 * 1024  # fall back to tiled GEMM above this


def _round_up(n, m):
    return ((n + m - 1) // m) * m


# ---------------------------------------------------------------------------
# Fused direct-conv kernel (primary path)
# ---------------------------------------------------------------------------
def _fused_conv_kernel(xs_ref, w_ref, b_ref, o_ref, *, taps, wq, m_img):
    # xs_ref: (1, M_src_pad, C4) bf16  -- one space-to-depth'd image (flat rows)
    # w_ref : (taps*taps, C4, N_pad) bf16  -- per-tap weight slabs (VMEM resident)
    # b_ref : (1, N_pad) f32
    # o_ref : (1, m_img, N_pad)       -- m_img = Hout*Wq (incl. garbage columns)
    n_pad = o_ref.shape[-1]
    acc = jnp.zeros((m_img, n_pad), jnp.float32)
    # (k/s)^2 taps, statically unrolled: each tap is a contiguous sublane-offset
    # slice of the same VMEM block -> fused im2col, no HBM patches matrix.
    for dh in range(taps):
        for dw in range(taps):
            off = dh * wq + dw                       # static element offset
            xt = xs_ref[0, pl.ds(off, m_img), :]     # (m_img, C4) bf16
            w_t = w_ref[dh * taps + dw]              # (C4, N_pad) bf16
            acc += jnp.dot(xt, w_t, preferred_element_type=jnp.float32)
    y = acc + b_ref[...]                             # bias in f32, once
    y = jnp.where(y > 0, y, NEG_SLOPE * y)           # LeakyReLU
    o_ref[0] = y.astype(o_ref.dtype)


def _fused_forward(x, weight, bias, k, s):
    B, Cin, H, W = x.shape
    Cout = weight.shape[0]
    taps = k // s                         # k % s == 0 guaranteed by dispatcher
    Hc, Wc = (H // s) * s, (W // s) * s   # valid conv never reads the cropped tail
    Hq, Wq = Hc // s, Wc // s
    Hout = (H - k) // s + 1
    Wout = (W - k) // s + 1
    C4 = s * s * Cin
    N_pad = _round_up(Cout, 128)          # lane-dense output / weight columns

    # --- cheap wrapper-side prep (one pass over x, bf16) ----------------------
    # NCHW -> NHWC bf16, crop to multiple of stride
    xh = jnp.transpose(x[:, :, :Hc, :Wc], (0, 2, 3, 1)).astype(jnp.bfloat16)
    # stride-phase space-to-depth: channel index = (ph*s + pw)*Cin + c
    xs = xh.reshape(B, Hq, s, Wq, s, Cin).transpose(0, 1, 3, 2, 4, 5)
    xs = xs.reshape(B, Hq * Wq, C4)
    m_img = Hout * Wq                     # per-image GEMM rows (incl. garbage cols)
    m_src = Hq * Wq
    m_src_pad = _round_up(m_src + taps * Wq, 8)   # headroom for wrap reads
    xs = jnp.pad(xs, ((0, 0), (0, m_src_pad - m_src), (0, 0)))

    # pack weights: w2[dh*taps+dw, (ph*s+pw)*Cin + c, co] = weight[co, c, dh*s+ph, dw*s+pw]
    w2 = weight.astype(jnp.bfloat16).reshape(Cout, Cin, taps, s, taps, s)
    w2 = jnp.transpose(w2, (2, 4, 3, 5, 1, 0)).reshape(taps * taps, C4, Cout)
    w2 = jnp.pad(w2, ((0, 0), (0, 0), (0, N_pad - Cout)))
    b2 = jnp.pad(bias.astype(jnp.float32), (0, N_pad - Cout)).reshape(1, N_pad)

    cost = pl.CostEstimate(
        flops=2 * B * m_img * C4 * N_pad * taps * taps,
        transcendentals=0,
        bytes_accessed=xs.size * 2 + w2.size * 2 + b2.size * 4
        + B * m_img * N_pad * jnp.dtype(x.dtype).itemsize,
    )

    out = pl.pallas_call(
        functools.partial(_fused_conv_kernel, taps=taps, wq=Wq, m_img=m_img),
        out_shape=jax.ShapeDtypeStruct((B, m_img, N_pad), x.dtype),
        grid_spec=pltpu.PrefetchScalarGridSpec(
            num_scalar_prefetch=0,
            grid=(B,),                                      # one image per step
            in_specs=[
                pl.BlockSpec((1, m_src_pad, C4), lambda b: (b, 0, 0)),
                pl.BlockSpec((taps * taps, C4, N_pad), lambda b: (0, 0, 0)),
                pl.BlockSpec((1, N_pad), lambda b: (0, 0)),
            ],
            out_specs=pl.BlockSpec((1, m_img, N_pad), lambda b: (b, 0, 0)),
        ),
        compiler_params=pltpu.CompilerParams(
            dimension_semantics=("parallel",),              # images split across TCs
            vmem_limit_bytes=48 * 1024 * 1024,              # v7x-safe (<64 MiB phys)
        ),
        cost_estimate=cost,
    )(xs, w2, b2)

    # (B, Hout*Wq, N_pad) -> drop garbage columns / channel padding -> NCHW.
    out = out.reshape(B, Hout, Wq, N_pad)[:, :, :Wout, :Cout]
    return jnp.transpose(out, (0, 3, 1, 2))


# ---------------------------------------------------------------------------
# Fallback: tiled im2col + GEMM (k % s != 0, or image too big for VMEM)
# ---------------------------------------------------------------------------
def _gemm_kernel_single_k(p_ref, w_ref, b_ref, o_ref):
    # single K step: no accumulator scratch, no init/finalize traffic
    y = jnp.dot(p_ref[...], w_ref[...], preferred_element_type=jnp.float32)
    y = y + b_ref[...]
    y = jnp.where(y > 0, y, NEG_SLOPE * y)
    o_ref[...] = y.astype(o_ref.dtype)


def _gemm_kernel_multi_k(p_ref, w_ref, b_ref, o_ref, acc_ref):
    kk = pl.program_id(2)

    @pl.when(kk == 0)
    def _init():
        acc_ref[...] = jnp.zeros_like(acc_ref)

    acc_ref[...] += jnp.dot(p_ref[...], w_ref[...],
                            preferred_element_type=jnp.float32)

    @pl.when(kk == pl.num_programs(2) - 1)
    def _finalize():
        y = acc_ref[...] + b_ref[...]
        y = jnp.where(y > 0, y, NEG_SLOPE * y)
        o_ref[...] = y.astype(o_ref.dtype)


def _im2col_bf16(x, k, s):
    """x: (B,Cin,H,W) -> (B*Ho*Wo, Cin*k*k) bf16, feature order (cin, kh, kw)."""
    B, C, H, W = x.shape
    Hout = (H - k) // s + 1
    Wout = (W - k) // s + 1
    x16 = x.astype(jnp.bfloat16)                    # cast BEFORE im2col
    cols = []
    for kh in range(k):
        for kw in range(k):
            cols.append(x16[:, :, kh:kh + s * Hout:s, kw:kw + s * Wout:s])
    cols = jnp.stack(cols, axis=2)                                  # (B,C,k*k,Ho,Wo)
    cols = jnp.transpose(cols, (0, 3, 4, 1, 2)).reshape(B * Hout * Wout, C * k * k)
    return cols, Hout, Wout


def _gemm_forward(x, weight, bias, k, s):
    B, Cin, H, W = x.shape
    Cout = weight.shape[0]

    patches, Hout, Wout = _im2col_bf16(x, k, s)                     # (M, K) bf16
    M, K = patches.shape

    # N: full padded Cout panel when it fits (A panel streamed once); 256-wide
    # tiles otherwise (v6e/v7x MXU is 256 wide).
    N_pad = _round_up(Cout, 128)
    if N_pad <= 512:
        tn = N_pad
    else:
        tn = 256
        N_pad = _round_up(N_pad, tn)

    # M: pad to 128 only; pick the largest tile that divides M_pad (no waste).
    M_pad = _round_up(M, 128)
    tm = next(t for t in (512, 384, 256, 128) if M_pad % t == 0)

    # K: single step when it fits, else 512-deep reduction tiles.
    K_pad = _round_up(K, 128)
    if K_pad <= 2048:
        tk = K_pad
    else:
        tk = 512
        K_pad = _round_up(K, tk)

    p_pad = jnp.pad(patches, ((0, M_pad - M), (0, K_pad - K)))
    w2d = weight.reshape(Cout, K).T.astype(jnp.bfloat16)            # (K, Cout)
    w_pad = jnp.pad(w2d, ((0, K_pad - K), (0, N_pad - Cout)))
    b_pad = jnp.pad(bias.astype(jnp.float32), (0, N_pad - Cout)).reshape(1, N_pad)

    n_k = K_pad // tk
    cost = pl.CostEstimate(
        flops=2 * M_pad * K_pad * N_pad,
        transcendentals=0,
        bytes_accessed=(M_pad * K_pad * 2) * (N_pad // tn)          # A re-reads
        + (K_pad * N_pad * 2) * (M_pad // tm)                       # B re-reads
        + M_pad * N_pad * jnp.dtype(x.dtype).itemsize,
    )
    out_shape = jax.ShapeDtypeStruct((M_pad, N_pad), x.dtype)

    if n_k == 1:
        out2d = pl.pallas_call(
            _gemm_kernel_single_k,
            out_shape=out_shape,
            grid_spec=pltpu.PrefetchScalarGridSpec(
                num_scalar_prefetch=0,
                grid=(M_pad // tm, N_pad // tn),
                in_specs=[
                    pl.BlockSpec((tm, tk), lambda i, j: (i, 0)),
                    pl.BlockSpec((tk, tn), lambda i, j: (0, j)),
                    pl.BlockSpec((1, tn), lambda i, j: (0, j)),
                ],
                out_specs=pl.BlockSpec((tm, tn), lambda i, j: (i, j)),
            ),
            compiler_params=pltpu.CompilerParams(
                dimension_semantics=("parallel", "parallel"),
                vmem_limit_bytes=32 * 1024 * 1024,
            ),
            cost_estimate=cost,
        )(p_pad, w_pad, b_pad)
    else:
        out2d = pl.pallas_call(
            _gemm_kernel_multi_k,
            out_shape=out_shape,
            grid_spec=pltpu.PrefetchScalarGridSpec(
                num_scalar_prefetch=0,
                grid=(M_pad // tm, N_pad // tn, n_k),
                in_specs=[
                    pl.BlockSpec((tm, tk), lambda i, j, kk: (i, kk)),
                    pl.BlockSpec((tk, tn), lambda i, j, kk: (kk, j)),
                    pl.BlockSpec((1, tn), lambda i, j, kk: (0, j)),
                ],
                out_specs=pl.BlockSpec((tm, tn), lambda i, j, kk: (i, j)),
                scratch_shapes=[pltpu.VMEM((tm, tn), jnp.float32)],
            ),
            compiler_params=pltpu.CompilerParams(
                dimension_semantics=("parallel", "parallel", "arbitrary"),
                vmem_limit_bytes=32 * 1024 * 1024,
            ),
            cost_estimate=cost,
        )(p_pad, w_pad, b_pad)

    out = out2d[:M, :Cout].reshape(B, Hout, Wout, Cout)
    return jnp.transpose(out, (0, 3, 1, 2))


# ---------------------------------------------------------------------------
# Dispatcher
# ---------------------------------------------------------------------------
def _forward(x, weight, bias, kernel_size, stride):
    B, Cin, H, W = x.shape
    Cout = weight.shape[0]
    k, s = kernel_size, stride
    if k % s == 0 and (H - k) // s + 1 > 0 and (W - k) // s + 1 > 0:
        # estimate fused-path VMEM footprint (per grid step, double-buffered)
        taps = k // s
        Hq, Wq = H // s, W // s
        Hout = (H - k) // s + 1
        C4 = s * s * Cin
        N_pad = _round_up(Cout, 128)
        m_img = Hout * Wq
        m_src_pad = _round_up(Hq * Wq + taps * Wq, 8)
        itemsize = jnp.dtype(x.dtype).itemsize
        est = (2 * m_src_pad * C4 * 2            # xs block, double-buffered bf16
               + taps * taps * C4 * N_pad * 2    # resident weight slabs
               + 2 * m_img * N_pad * itemsize    # out block, double-buffered
               + m_img * N_pad * 4)              # f32 accumulator
        if est <= _FUSED_VMEM_BUDGET:
            return _fused_forward(x, weight, bias, k, s)
    return _gemm_forward(x, weight, bias, k, s)


@functools.partial(jax.jit, static_argnames=("kernel_size", "stride"))
def encoder_block_forward(x, weight, bias, kernel_size=4, stride=2):
    """x: (B, Cin, H, W) NCHW; weight: (Cout, Cin, Kh, Kw); bias: (Cout,)."""
    return _forward(x, weight, bias, kernel_size, stride)


if __name__ == "__main__":
    key = jax.random.PRNGKey(0)
    k_x, k_w, k_b = jax.random.split(key, 3)

    B, Cin, H, W = 2, 4, 16, 16
    Cout, ksz, stride = 8, 4, 2

    x = jax.random.normal(k_x, (B, Cin, H, W), dtype=jnp.float32)
    fan_in = Cin * ksz * ksz
    weight = jax.random.normal(k_w, (Cout, Cin, ksz, ksz), dtype=jnp.float32) / jnp.sqrt(fan_in)
    bias = jax.random.normal(k_b, (Cout,), dtype=jnp.float32) * 0.01

    out = encoder_block_forward(x, weight, bias, kernel_size=ksz, stride=stride)
    out = jax.block_until_ready(out)

    # Reference: f32 XLA conv + bias + LeakyReLU (kernel uses bf16 MXU operands
    # with f32 accumulation, so tolerances are loosened accordingly).
    ref = jax.lax.conv_general_dilated(
        x, weight, window_strides=(stride, stride), padding="VALID",
        dimension_numbers=("NCHW", "OIHW", "NCHW"),
    ) + bias.reshape(1, Cout, 1, 1)
    ref = jnp.where(ref > 0, ref, NEG_SLOPE * ref)

    assert out.shape == (B, Cout, (H - ksz) // stride + 1, (W - ksz) // stride + 1)
    assert jnp.allclose(out, ref, atol=5e-2, rtol=5e-2), "mismatch vs reference"

    print("KERNEL_OK")
</pallas_src>

<mosaic_0001>
module attributes {stable_mosaic.version = 11 : i64} {
  func.func @_fused_conv_kernel(%arg0: i32, %arg1: memref<1x80x16xbf16, #tpu.memory_space<vmem>>, %arg2: memref<4x16x128xbf16, #tpu.memory_space<vmem>>, %arg3: memref<1x128xf32, #tpu.memory_space<vmem>>, %arg4: memref<1x56x128xf32, #tpu.memory_space<vmem>>) attributes {dimension_semantics = [#tpu.dimension_semantics<parallel>], iteration_bounds = array<i64: 2>, scalar_prefetch = 0 : i64, scratch_operands = 0 : i64, tpu.core_type = #tpu.core_type<tc>, window_params = [{transform_indices = @transform_0, window_bounds = array<i64: 1, 80, 16>}, {pipeline_mode = #tpu.pipeline_mode<synchronous>, transform_indices = @transform_1, window_bounds = array<i64: 4, 16, 128>}, {pipeline_mode = #tpu.pipeline_mode<synchronous>, transform_indices = @transform_2, window_bounds = array<i64: 1, 128>}, {transform_indices = @transform_3, window_bounds = array<i64: 1, 56, 128>}]} {
    %cst = arith.constant 0.000000e+00 : f32
    %0 = vector.broadcast %cst : f32 to vector<56x128xf32>
    %c0 = arith.constant 0 : index
    %c0_0 = arith.constant 0 : index
    %c0_1 = arith.constant 0 : index
    %1 = vector.load %arg1[%c0, %c0_0, %c0_1] : memref<1x80x16xbf16, #tpu.memory_space<vmem>>, vector<1x56x16xbf16>
    %2 = vector.shape_cast %1 : vector<1x56x16xbf16> to vector<56x16xbf16>
    %c0_2 = arith.constant 0 : index
    %c0_3 = arith.constant 0 : index
    %c0_4 = arith.constant 0 : index
    %3 = vector.load %arg2[%c0_2, %c0_3, %c0_4] : memref<4x16x128xbf16, #tpu.memory_space<vmem>>, vector<1x16x128xbf16>
    %4 = vector.shape_cast %3 : vector<1x16x128xbf16> to vector<16x128xbf16>
    %cst_5 = arith.constant dense<0.000000e+00> : vector<56x128xf32>
    %5 = tpu.matmul %2, %4, %cst_5 {dimension_numbers = #tpu.dot_dimension_numbers<[1], [0], [0], [1], [0, 0, 1, 1], [], []>} : vector<56x16xbf16>, vector<16x128xbf16>, vector<56x128xf32> -> vector<56x128xf32>
    %6 = arith.addf %0, %5 : vector<56x128xf32>
    %c0_6 = arith.constant 0 : index
    %c1 = arith.constant 1 : index
    %c0_7 = arith.constant 0 : index
    %7 = vector.load %arg1[%c0_6, %c1, %c0_7] : memref<1x80x16xbf16, #tpu.memory_space<vmem>>, vector<1x56x16xbf16>
    %8 = vector.shape_cast %7 : vector<1x56x16xbf16> to vector<56x16xbf16>
    %c1_8 = arith.constant 1 : index
    %c0_9 = arith.constant 0 : index
    %c0_10 = arith.constant 0 : index
    %9 = vector.load %arg2[%c1_8, %c0_9, %c0_10] : memref<4x16x128xbf16, #tpu.memory_space<vmem>>, vector<1x16x128xbf16>
    %10 = vector.shape_cast %9 : vector<1x16x128xbf16> to vector<16x128xbf16>
    %cst_11 = arith.constant dense<0.000000e+00> : vector<56x128xf32>
    %11 = tpu.matmul %8, %10, %cst_11 {dimension_numbers = #tpu.dot_dimension_numbers<[1], [0], [0], [1], [0, 0, 1, 1], [], []>} : vector<56x16xbf16>, vector<16x128xbf16>, vector<56x128xf32> -> vector<56x128xf32>
    %12 = arith.addf %6, %11 : vector<56x128xf32>
    %c0_12 = arith.constant 0 : index
    %c8 = arith.constant 8 : index
    %c0_13 = arith.constant 0 : index
    %13 = vector.load %arg1[%c0_12, %c8, %c0_13] : memref<1x80x16xbf16, #tpu.memory_space<vmem>>, vector<1x56x16xbf16>
    %14 = vector.shape_cast %13 : vector<1x56x16xbf16> to vector<56x16xbf16>
    %c2 = arith.constant 2 : index
    %c0_14 = arith.constant 0 : index
    %c0_15 = arith.constant 0 : index
    %15 = vector.load %arg2[%c2, %c0_14, %c0_15] : memref<4x16x128xbf16, #tpu.memory_space<vmem>>, vector<1x16x128xbf16>
    %16 = vector.shape_cast %15 : vector<1x16x128xbf16> to vector<16x128xbf16>
    %cst_16 = arith.constant dense<0.000000e+00> : vector<56x128xf32>
    %17 = tpu.matmul %14, %16, %cst_16 {dimension_numbers = #tpu.dot_dimension_numbers<[1], [0], [0], [1], [0, 0, 1, 1], [], []>} : vector<56x16xbf16>, vector<16x128xbf16>, vector<56x128xf32> -> vector<56x128xf32>
    %18 = arith.addf %12, %17 : vector<56x128xf32>
    %c0_17 = arith.constant 0 : index
    %c9 = arith.constant 9 : index
    %c0_18 = arith.constant 0 : index
    %19 = vector.load %arg1[%c0_17, %c9, %c0_18] : memref<1x80x16xbf16, #tpu.memory_space<vmem>>, vector<1x56x16xbf16>
    %20 = vector.shape_cast %19 : vector<1x56x16xbf16> to vector<56x16xbf16>
    %c3 = arith.constant 3 : index
    %c0_19 = arith.constant 0 : index
    %c0_20 = arith.constant 0 : index
    %21 = vector.load %arg2[%c3, %c0_19, %c0_20] : memref<4x16x128xbf16, #tpu.memory_space<vmem>>, vector<1x16x128xbf16>
    %22 = vector.shape_cast %21 : vector<1x16x128xbf16> to vector<16x128xbf16>
    %cst_21 = arith.constant dense<0.000000e+00> : vector<56x128xf32>
    %23 = tpu.matmul %20, %22, %cst_21 {dimension_numbers = #tpu.dot_dimension_numbers<[1], [0], [0], [1], [0, 0, 1, 1], [], []>} : vector<56x16xbf16>, vector<16x128xbf16>, vector<56x128xf32> -> vector<56x128xf32>
    %24 = arith.addf %18, %23 : vector<56x128xf32>
    %c0_22 = arith.constant 0 : index
    %c0_23 = arith.constant 0 : index
    %25 = vector.load %arg3[%c0_22, %c0_23] : memref<1x128xf32, #tpu.memory_space<vmem>>, vector<1x128xf32>
    %26 = vector.broadcast %25 : vector<1x128xf32> to vector<56x128xf32>
    %27 = arith.addf %24, %26 : vector<56x128xf32>
    %cst_24 = arith.constant 0.000000e+00 : f32
    %28 = vector.broadcast %cst_24 : f32 to vector<56x128xf32>
    %29 = arith.cmpf ogt, %27, %28 : vector<56x128xf32>
    %cst_25 = arith.constant 0.00999999977 : f32
    %30 = vector.broadcast %cst_25 : f32 to vector<56x128xf32>
    %31 = arith.mulf %30, %27 : vector<56x128xf32>
    %32 = arith.select %29, %27, %31 : vector<56x128xi1>, vector<56x128xf32>
    %c0_26 = arith.constant 0 : index
    %c0_27 = arith.constant 0 : index
    %c0_28 = arith.constant 0 : index
    %33 = vector.load %arg4[%c0_26, %c0_27, %c0_28] : memref<1x56x128xf32, #tpu.memory_space<vmem>>, vector<1x56x128xf32>
    %34 = vector.shape_cast %33 : vector<1x56x128xf32> to vector<56x128xf32>
    %35 = vector.shape_cast %32 : vector<56x128xf32> to vector<1x56x128xf32>
    tpu.vector_store %arg4[%c0_26, %c0_27, %c0_28], %35 {strides = array<i32>} : memref<1x56x128xf32, #tpu.memory_space<vmem>>, vector<1x56x128xf32>,
    return
  }
  func.func @transform_0(%arg0: i32) -> (i32, i32, i32) {
    %c0_i32 = arith.constant 0 : i32
    %c0_i32_0 = arith.constant 0 : i32
    %c0_i32_1 = arith.constant 0 : i32
    return %arg0, %c0_i32, %c0_i32_0 : i32, i32, i32
  }
  func.func @transform_1(%arg0: i32) -> (i32, i32, i32) {
    %c0_i32 = arith.constant 0 : i32
    %c0_i32_0 = arith.constant 0 : i32
    %c0_i32_1 = arith.constant 0 : i32
    %c0_i32_2 = arith.constant 0 : i32
    return %c0_i32, %c0_i32_0, %c0_i32_1 : i32, i32, i32
  }
  func.func @transform_2(%arg0: i32) -> (i32, i32) {
    %c0_i32 = arith.constant 0 : i32
    %c0_i32_0 = arith.constant 0 : i32
    %c0_i32_1 = arith.constant 0 : i32
    return %c0_i32, %c0_i32_0 : i32, i32
  }
  func.func @transform_3(%arg0: i32) -> (i32, i32, i32) {
    %c0_i32 = arith.constant 0 : i32
    %c0_i32_0 = arith.constant 0 : i32
    %c0_i32_1 = arith.constant 0 : i32
    return %arg0, %c0_i32, %c0_i32_0 : i32, i32, i32
  }
}

</mosaic_0001>

<llo_original>
// kernel: encoder_block_forward.1
$region0: #{encoder_block_forward.1}
  #allocation0 [shape = 'u32[]', space=smem, size = 0x4, offset = 0x4, fixed_abs, tag = 'smem constant byte address 0x4 - core index']
  #allocation1 [shape = 'u32[144,128]{1,0:T(1,128)}', space=vmem, size = 0x12000, scoped, tag = 'internal scratch']
  %s0 = inlined_call_operand.vmem [shape: bf16[2,80,16], index: 0, kind: input, shape index: {}]
  %s1 = inlined_call_operand.vmem [shape: bf16[4,16,128], index: 1, kind: input, shape index: {}]
  %s2 = inlined_call_operand.vmem [shape: f32[1,128], index: 2, kind: input, shape index: {}]
  %s3 = inlined_call_operand.vmem [shape: f32[2,56,128], index: 3, kind: output, shape index: {}]
  %s4 = sld [smem:[#allocation0]]
  $region45: #{encoder_block_forward.1} parent=0
    _
  %s6 = ssub.s32 1, %s4
  %s7 = scalar_select 0, %s6, %s4
  loop: start=0, step=1, limit=4
  $region2: #{encoder_block_forward.1} parent=0 // loop_pre_header
    _
  $region3: #{encoder_block_forward.1} parent=0 // loop_header
    %s9 = sphi 0, %s13
    %p10 = scmp.ge.s32.totalorder %s9, 4
    %s19 = sphi 0, %s21
    %s22 = sphi 0, %s19
    %s23 = sphi 0, %s22
    %s39 = sphi 0, %s23
    %s43 = sphi 0, %s43
    %s45 = sphi 0, %s43
    %s46 = sphi 0, %s45
    %s60 = sphi 0, %s46
    %s64 = sphi 0, %s64
    %s66 = sphi 0, %s64
    %s67 = sphi 0, %s66
    %s81 = sphi 0, %s67
    %s87 = sphi 0, %s89
    %s90 = sphi 0, %s87
    %s91 = sphi 0, %s90
    %s107 = sphi 0, %s91
  $region4: #{encoder_block_forward.1} parent=0 // loop_header_branch
    %12 = sbr.rel (%p10) target = $region8
  $region5: #{encoder_block_forward.1} parent=0 // loop_body
    %s14 = ssub.s32 %s9, 1
    %s15 = ssub.s32 %s9, 2
    %s16 = sadd.s32 %s9, 1
    %s17 = ssub.s32 %s9, %s16
    %p18 = scmp.eq.s32.totalorder %s17, 0
    %s20 = sadd.s32 %s19, 1
    %s21 = scalar_select %p18, %s19, %s20
    %p24 = pneg %p18
    %p25 = scmp.eq.s32.totalorder %s9, 1
    %p26 = por %p24, %p25
    %p27 = scmp.ne.s32.totalorder %s19, %s22
    %p28 = scmp.eq.s32.totalorder %s9, 0
    %p29 = por %p27, %p28
    %p30 = scmp.ne.s32.totalorder %s19, %s22
    %p31 = scmp.eq.s32.totalorder %s14, 1
    %p32 = por %p30, %p31
    %p33 = scmp.ne.s32.totalorder %s22, %s23
    %p34 = scmp.eq.s32.totalorder %s14, 0
    %p35 = por %p33, %p34
    %p36 = scmp.ne.s32.totalorder %s22, %s23
    %p37 = scmp.eq.s32.totalorder %s15, 1
    %p38 = por %p36, %p37
    %p40 = scmp.ne.s32.totalorder %s23, %s39
    %p41 = scmp.eq.s32.totalorder %s15, 0
    %p42 = por %p40, %p41
    %s44 = sadd.s32 %s43, 1
    %p47 = scmp.eq.s32.totalorder %s9, 1
    %p48 = scmp.ne.s32.totalorder %s43, %s45
    %p49 = scmp.eq.s32.totalorder %s9, 0
    %p50 = por %p48, %p49
    %p51 = scmp.ne.s32.totalorder %s43, %s45
    %p52 = scmp.eq.s32.totalorder %s14, 1
    %p53 = por %p51, %p52
    %p54 = scmp.ne.s32.totalorder %s45, %s46
    %p55 = scmp.eq.s32.totalorder %s14, 0
    %p56 = por %p54, %p55
    %p57 = scmp.ne.s32.totalorder %s45, %s46
    %p58 = scmp.eq.s32.totalorder %s15, 1
    %p59 = por %p57, %p58
    %p61 = scmp.ne.s32.totalorder %s46, %s60
    %p62 = scmp.eq.s32.totalorder %s15, 0
    %p63 = por %p61, %p62
    %s65 = sadd.s32 %s64, 1
    %p68 = scmp.eq.s32.totalorder %s9, 1
    %p69 = scmp.ne.s32.totalorder %s64, %s66
    %p70 = scmp.eq.s32.totalorder %s9, 0
    %p71 = por %p69, %p70
    %p72 = scmp.ne.s32.totalorder %s64, %s66
    %p73 = scmp.eq.s32.totalorder %s14, 1
    %p74 = por %p72, %p73
    %p75 = scmp.ne.s32.totalorder %s66, %s67
    %p76 = scmp.eq.s32.totalorder %s14, 0
    %p77 = por %p75, %p76
    %p78 = scmp.ne.s32.totalorder %s66, %s67
    %p79 = scmp.eq.s32.totalorder %s15, 1
    %p80 = por %p78, %p79
    %p82 = scmp.ne.s32.totalorder %s67, %s81
    %p83 = scmp.eq.s32.totalorder %s15, 0
    %p84 = por %p82, %p83
    %s85 = ssub.s32 %s9, %s16
    %p86 = scmp.eq.s32.totalorder %s85, 0
    %s88 = sadd.s32 %s87, 1
    %s89 = scalar_select %p86, %s87, %s88
    %p92 = pneg %p86
    %p93 = scmp.eq.s32.totalorder %s9, 1
    %p94 = por %p92, %p93
    %p95 = scmp.ne.s32.totalorder %s87, %s90
    %p96 = scmp.eq.s32.totalorder %s9, 0
    %p97 = por %p95, %p96
    %p98 = scmp.ne.s32.totalorder %s87, %s90
    %p99 = scmp.eq.s32.totalorder %s14, 1
    %p100 = por %p98, %p99
    %p101 = scmp.ne.s32.totalorder %s90, %s91
    %p102 = scmp.eq.s32.totalorder %s14, 0
    %p103 = por %p101, %p102
    %p104 = scmp.ne.s32.totalorder %s90, %s91
    %p105 = scmp.eq.s32.totalorder %s15, 1
    %p106 = por %p104, %p105
    %p108 = scmp.ne.s32.totalorder %s91, %s107
    %p109 = scmp.eq.s32.totalorder %s15, 0
    %p110 = por %p108, %p109
    %p111 = scmp.le.s32.totalorder 1, %s9
    %p112 = scmp.lt.s32.totalorder %s9, 3
    %p113 = pnand %p111, %p112
    %p114 = pneg %p113
    // Predicated region
    $region9: #{encoder_block_forward.1} parent=5 // pred_check
      _
    $region10: #{encoder_block_forward.1} parent=5 // pred_check_branch
      %116 = sbr.rel (%p113) target = $region12
    $region11: #{encoder_block_forward.1} parent=5 // pred_region
      %s117 = ssub.s32 %s9, 1
      // Predicated region
      $region13: #{encoder_block_forward.1} parent=11 // pred_check
        %p118 = pneg %p56
      $region14: #{encoder_block_forward.1} parent=11 // pred_check_branch
        %120 = sbr.rel (%p118) target = $region16
      $region15: #{encoder_block_forward.1} parent=11 // pred_region
        _
      $region16: #{encoder_block_forward.1} parent=11 // pred_fallthru
        _
      // Predicated region
      $region17: #{encoder_block_forward.1} parent=11 // pred_check
        %p121 = pneg %p77
      $region18: #{encoder_block_forward.1} parent=11 // pred_check_branch
        %123 = sbr.rel (%p121) target = $region20
      $region19: #{encoder_block_forward.1} parent=11 // pred_region
        _
      $region20: #{encoder_block_forward.1} parent=11 // pred_fallthru
        _
    $region12: #{encoder_block_forward.1} parent=5 // pred_fallthru
      _
    %p124 = scmp.lt.s32.totalorder %s9, 2
    // Predicated region
    $region21: #{encoder_block_forward.1} parent=5 // pred_check
      %p125 = pneg %p124
    $region22: #{encoder_block_forward.1} parent=5 // pred_check_branch
      %127 = sbr.rel (%p125) target = $region24
    $region23: #{encoder_block_forward.1} parent=5 // pred_region
      // Predicated region
      $region25: #{encoder_block_forward.1} parent=23 // pred_check
        %p128 = pneg %p29
      $region26: #{encoder_block_forward.1} parent=23 // pred_check_branch
        %130 = sbr.rel (%p128) target = $region28
      $region27: #{encoder_block_forward.1} parent=23 // pred_region
        %p131 = scmp.lt.s32.totalorder %s9, 1
        %s132 = scalar_select %p131, %s9, 1
        %s133 = smul.addr %s132, 10
        %s134 = smul.addr %s133, 4
        %s135 = scalar_lea.vmem %s0, %s134
      $region28: #{encoder_block_forward.1} parent=23 // pred_fallthru
        _
    $region24: #{encoder_block_forward.1} parent=5 // pred_fallthru
      _
    %p136 = scmp.le.s32.totalorder 1, %s9
    %p137 = scmp.lt.s32.totalorder %s9, 3
    %p138 = pnand %p136, %p137
    %p139 = pneg %p138
    // Predicated region
    $region29: #{encoder_block_forward.1} parent=5 // pred_check
      _
    $region30: #{encoder_block_forward.1} parent=5 // pred_check_branch
      %141 = sbr.rel (%p138) target = $region32
    $region31: #{encoder_block_forward.1} parent=5 // pred_region
      %s142 = ssub.s32 %s9, 1
      %p143 = scmp.lt.s32.totalorder %s14, 1
      %s144 = scalar_select %p143, %s14, 1
      %s145 = smul.addr %s144, 10
      %s146 = smul.addr %s145, 4
      %s147 = scalar_lea.vmem %s0, %s146
      %p148 = pneg %p35
      %p149 = pneg %p32
      %p150 = pneg %p56
      %p151 = pneg %p53
      %p152 = pneg %p77
      %p153 = pneg %p74
      %p154 = pneg %p103
      %p155 = pneg %p100
      %p156 = scmp.lt.s32.totalorder %s14, 1
      %s157 = scalar_select %p156, %s14, 1
      %s158 = smul.addr %s157, 7
      %s159 = smul.addr %s158, 8
      %s160 = scalar_lea.vmem %s3, %s159
      %p161 = scmp.lt.s32.totalorder %s14, 1
      %s162 = scalar_select %p161, %s14, 1
      %s163 = smul.addr %s162, 10
      %s164 = smul.addr %s163, 4
      %s165 = scalar_lea.vmem %s0, %s164
      %p166 = scmp.lt.s32.totalorder %s14, 1
      %s167 = scalar_select %p166, %s14, 1
      %s168 = smul.addr %s167, 7
      %s169 = smul.addr %s168, 8
      %s170 = scalar_lea.vmem %s3, %s169
      %v172 = vld [vmem:[%s165] sm:$0xf]
      %v173 = vld [vmem:[%s165 + $0x4] sm:$0xf]
      %v174 = vld [vmem:[%s165 + $0x8] sm:$0xf]
      %v175 = vld [vmem:[%s165 + $0xc] sm:$0xf]
      %v176 = vld [vmem:[%s165 + $0x10] sm:$0xf]
      %v177 = vld [vmem:[%s165 + $0x14] sm:$0xf]
      %v178 = vld [vmem:[%s165 + $0x18] sm:$0xf]
      %v179 = vld [vmem:[%s1] sm:$0xf]
      %v180 = vld [vmem:[%s1 + $0x4] sm:$0xf]
      %v181 = vld [vmem:[%s165 + $0x1c] sm:$0x1]
      %s182 = scalar_lea.vmem %s1, 8
      %v183 = vld [vmem:[%s182] sm:$0xf]
      %v184 = vld [vmem:[%s182 + $0x4] sm:$0xf]
      %v193 = vunpack.c.l.b16 %v172
      %v194 = vunpack.c.l.b16 %v173
      %v195 = vunpack.c.l.b16 %v174
      %v196 = vunpack.c.l.b16 %v175
      %v197 = vunpack.c.l.b16 %v176
      %v198 = vunpack.c.l.b16 %v177
      %v199 = vunpack.c.l.b16 %v178
      %v200 = vunpack.c.l.b16 %v181
      %v201 = vpack.c.b16 %v194, %v193
      %v202 = vpack.c.b16 %v196, %v195
      %v203 = vpack.c.b16 %v198, %v197
      %v204 = vpack.c.b16 %v200, %v199
      %vm205 = vsmask.f32 7424
      %v207 = vshrl.u32 %v201, 16
      %v209 = vshll.u32 %v201, 16
      %v211 = vrot.slane %v209, 1
      %v212 = vor.u32 %v207, %v211
      %v214 = vshll.u32 %v202, 16
      %v216 = vrot.slane %v214, 1
      %v217 = vsel %vm205, %v212, %v216
      %v218 = vshrl.u32 %v202, 16
      %v220 = vor.u32 %v218, %v216
      %v222 = vshll.u32 %v203, 16
      %v224 = vrot.slane %v222, 1
      %v225 = vsel %vm205, %v220, %v224
      %v226 = vshrl.u32 %v203, 16
      %v228 = vor.u32 %v226, %v224
      %v230 = vshll.u32 %v204, 16
      %v232 = vrot.slane %v230, 1
      %v233 = vsel %vm205, %v228, %v232
      %v234 = vshrl.u32 %v204, 16
      %v236 = vor.u32 %v234, %v232
      %v239 = vunpack.c.l.b16 %v183
      %v240 = vunpack.c.l.b16 %v184
      %v241 = vpack.c.b16 %v240, %v239
      %vm243 = vcmask 130048
      %v245 = vsel %vm243, %v217, 0
      %v248 = vsel %vm243, %v225, 0
      %v251 = vsel %vm243, %v233, 0
      %v254 = vsel %vm243, %v236, 0
      %256 = vmatprep.subr.bf16.mxu0 0
      %257 = vmatpush1.bf16.msra.mxu0 0
      %258 = vmatprep.subr.bf16.mxu0 0
      %259 = vmatpush1.bf16.msra.mxu0 0
      %260 = vmatprep.subr.bf16.mxu0 0
      %261 = vmatpush1.bf16.msra.mxu0 0
      %262 = vmatprep.subr.bf16.mxu0 0
      %263 = vmatpush1.bf16.msra.mxu0 0
      %264 = vmatprep.subr.bf16.mxu0 0
      %265 = vmatpush1.bf16.msra.mxu0 0
      %266 = vmatprep.subr.bf16.mxu0 0
      %267 = vmatpush1.bf16.msra.mxu0 0
      %268 = vmatprep.subr.bf16.mxu0 0
      %269 = vmatpush1.bf16.msra.mxu0 0
      %270 = vmatprep.subr.bf16.mxu0 0
      %271 = vmatpush1.bf16.msra.mxu0 %v241
      %272 = vmatprep.subr.bf16.mxu0 0
      %273 = vmatpush2.bf16.msra.mxu0 0
      %274 = vmatprep.subr.bf16.mxu0 0
      %275 = vmatpush2.bf16.msra.mxu0 0
      %276 = vmatprep.subr.bf16.mxu0 0
      %277 = vmatpush2.bf16.msra.mxu0 0
      %278 = vmatprep.subr.bf16.mxu0 0
      %279 = vmatpush2.bf16.msra.mxu0 0
      %280 = vmatprep.subr.bf16.mxu0 0
      %281 = vmatpush2.bf16.msra.mxu0 0
      %282 = vmatprep.subr.bf16.mxu0 0
      %283 = vmatpush2.bf16.msra.mxu0 0
      %284 = vmatprep.subr.bf16.mxu0 0
      %285 = vmatpush2.bf16.msra.mxu0 0
      %286 = vmatprep.subr.bf16.mxu0 0
      %287 = vmatpush2.bf16.msra.mxu0 0
      %288 = vmatprep.mubr.bf16.mxu0 0
      %289 = vmatmul.mubr.bf16.gmra.mxu0 %v245
      %v290 = vpop.f32.mrf.mxu0
      %v291 = vadd.f32 0.0, %v290
      %v292 = vpop.f32.mrf.mxu0
      %v293 = vpop.f32.mrf.mxu0
      %v294 = vadd.f32 0.0, %v293
      %v295 = vpop.f32.mrf.mxu0
      %296 = vmatprep.mubr.bf16.mxu0 0
      %297 = vmatmul.mubr.bf16.gmra.mxu0 %v248
      %v298 = vpop.f32.mrf.mxu0
      %v299 = vadd.f32 0.0, %v298
      %v300 = vpop.f32.mrf.mxu0
      %v301 = vpop.f32.mrf.mxu0
      %v302 = vadd.f32 0.0, %v301
      %v303 = vpop.f32.mrf.mxu0
      %304 = vmatprep.mubr.bf16.mxu0 0
      %305 = vmatmul.mubr.bf16.gmra.mxu0 %v251
      %v306 = vpop.f32.mrf.mxu0
      %v307 = vadd.f32 0.0, %v306
      %v308 = vpop.f32.mrf.mxu0
      %v309 = vpop.f32.mrf.mxu0
      %v310 = vadd.f32 0.0, %v309
      %v311 = vpop.f32.mrf.mxu0
      %312 = vmatprep.mubr.bf16.mxu0 0
      %313 = vmatmul.mubr.bf16.gmra.mxu0 %v254
      %v314 = vpop.f32.mrf.mxu0
      %v315 = vadd.f32 0.0, %v314
      %v316 = vpop.f32.mrf.mxu0
      %v317 = vpop.f32.mrf.mxu0
      %v318 = vpop.f32.mrf.mxu0
      %319 = vdwg.mxu0
      %v320 = vpack.c.b16 %v199, %v199
      %v323 = vunpack.c.l.b16 %v179
      %v324 = vunpack.c.l.b16 %v180
      %v325 = vpack.c.b16 %v324, %v323
      %v327 = vsel %vm243, %v201, 0
      %v329 = vsel %vm243, %v202, 0
      %v331 = vsel %vm243, %v203, 0
      %v334 = vsel %vm243, %v320, 0
      %336 = vmatprep.subr.bf16.mxu0 0
      %337 = vmatpush1.bf16.msra.mxu0 0
      %338 = vmatprep.subr.bf16.mxu0 0
      %339 = vmatpush1.bf16.msra.mxu0 0
      %340 = vmatprep.subr.bf16.mxu0 0
      %341 = vmatpush1.bf16.msra.mxu0 0
      %342 = vmatprep.subr.bf16.mxu0 0
      %343 = vmatpush1.bf16.msra.mxu0 0
      %344 = vmatprep.subr.bf16.mxu0 0
      %345 = vmatpush1.bf16.msra.mxu0 0
      %346 = vmatprep.subr.bf16.mxu0 0
      %347 = vmatpush1.bf16.msra.mxu0 0
      %348 = vmatprep.subr.bf16.mxu0 0
      %349 = vmatpush1.bf16.msra.mxu0 0
      %350 = vmatprep.subr.bf16.mxu0 0
      %351 = vmatpush1.bf16.msra.mxu0 %v325
      %352 = vmatprep.subr.bf16.mxu0 0
      %353 = vmatpush2.bf16.msra.mxu0 0
      %354 = vmatprep.subr.bf16.mxu0 0
      %355 = vmatpush2.bf16.msra.mxu0 0
      %356 = vmatprep.subr.bf16.mxu0 0
      %357 = vmatpush2.bf16.msra.mxu0 0
      %358 = vmatprep.subr.bf16.mxu0 0
      %359 = vmatpush2.bf16.msra.mxu0 0
      %360 = vmatprep.subr.bf16.mxu0 0
      %361 = vmatpush2.bf16.msra.mxu0 0
      %362 = vmatprep.subr.bf16.mxu0 0
      %363 = vmatpush2.bf16.msra.mxu0 0
      %364 = vmatprep.subr.bf16.mxu0 0
      %365 = vmatpush2.bf16.msra.mxu0 0
      %366 = vmatprep.subr.bf16.mxu0 0
      %367 = vmatpush2.bf16.msra.mxu0 0
      %368 = vmatprep.mubr.bf16.mxu0 0
      %369 = vmatmul.mubr.bf16.gmra.mxu0 %v327
      %v370 = vpop.f32.mrf.mxu0
      %v371 = vadd.f32 %v291, %v370
      %v372 = vpop.f32.mrf.mxu0
      %v373 = vpop.f32.mrf.mxu0
      %v374 = vadd.f32 %v294, %v373
      %v375 = vpop.f32.mrf.mxu0
      %376 = vmatprep.mubr.bf16.mxu0 0
      %377 = vmatmul.mubr.bf16.gmra.mxu0 %v329
      %v378 = vpop.f32.mrf.mxu0
      %v379 = vadd.f32 %v299, %v378
      %v380 = vpop.f32.mrf.mxu0
      %v381 = vpop.f32.mrf.mxu0
      %v382 = vadd.f32 %v302, %v381
      %v383 = vpop.f32.mrf.mxu0
      %384 = vmatprep.mubr.bf16.mxu0 0
      %385 = vmatmul.mubr.bf16.gmra.mxu0 %v331
      %v386 = vpop.f32.mrf.mxu0
      %v387 = vadd.f32 %v307, %v386
      %v388 = vpop.f32.mrf.mxu0
      %v389 = vpop.f32.mrf.mxu0
      %v390 = vadd.f32 %v310, %v389
      %v391 = vpop.f32.mrf.mxu0
      %392 = vmatprep.mubr.bf16.mxu0 0
      %393 = vmatmul.mubr.bf16.gmra.mxu0 %v334
      %v394 = vpop.f32.mrf.mxu0
      %v395 = vadd.f32 %v315, %v394
      %v396 = vpop.f32.mrf.mxu0
      %v397 = vpop.f32.mrf.mxu0
      %v398 = vpop.f32.mrf.mxu0
      %399 = vdwg.mxu0
      %v400 = vld [vmem:[%s165 + $0x1c] sm:$0xf]
      %s401 = scalar_lea.vmem %s1, 16
      %v402 = vld [vmem:[%s401] sm:$0xf]
      %v403 = vld [vmem:[%s401 + $0x4] sm:$0xf]
      %v405 = vunpack.c.l.b16 %v400
      %v406 = vpack.c.b16 %v195, %v194
      %v407 = vpack.c.b16 %v197, %v196
      %v408 = vpack.c.b16 %v199, %v198
      %v409 = vpack.c.b16 %v405, %v405
      %v412 = vunpack.c.l.b16 %v402
      %v413 = vunpack.c.l.b16 %v403
      %v414 = vpack.c.b16 %v413, %v412
      %v417 = vsel %vm243, %v406, 0
      %v420 = vsel %vm243, %v407, 0
      %v423 = vsel %vm243, %v408, 0
      %v426 = vsel %vm243, %v409, 0
      %428 = vmatprep.subr.bf16.mxu0 0
      %429 = vmatpush1.bf16.msra.mxu0 0
      %430 = vmatprep.subr.bf16.mxu0 0
      %431 = vmatpush1.bf16.msra.mxu0 0
      %432 = vmatprep.subr.bf16.mxu0 0
      %433 = vmatpush1.bf16.msra.mxu0 0
      %434 = vmatprep.subr.bf16.mxu0 0
      %435 = vmatpush1.bf16.msra.mxu0 0
      %436 = vmatprep.subr.bf16.mxu0 0
      %437 = vmatpush1.bf16.msra.mxu0 0
      %438 = vmatprep.subr.bf16.mxu0 0
      %439 = vmatpush1.bf16.msra.mxu0 0
      %440 = vmatprep.subr.bf16.mxu0 0
      %441 = vmatpush1.bf16.msra.mxu0 0
      %442 = vmatprep.subr.bf16.mxu0 0
      %443 = vmatpush1.bf16.msra.mxu0 %v414
      %444 = vmatprep.subr.bf16.mxu0 0
      %445 = vmatpush2.bf16.msra.mxu0 0
      %446 = vmatprep.subr.bf16.mxu0 0
      %447 = vmatpush2.bf16.msra.mxu0 0
      %448 = vmatprep.subr.bf16.mxu0 0
      %449 = vmatpush2.bf16.msra.mxu0 0
      %450 = vmatprep.subr.bf16.mxu0 0
      %451 = vmatpush2.bf16.msra.mxu0 0
      %452 = vmatprep.subr.bf16.mxu0 0
      %453 = vmatpush2.bf16.msra.mxu0 0
      %454 = vmatprep.subr.bf16.mxu0 0
      %455 = vmatpush2.bf16.msra.mxu0 0
      %456 = vmatprep.subr.bf16.mxu0 0
      %457 = vmatpush2.bf16.msra.mxu0 0
      %458 = vmatprep.subr.bf16.mxu0 0
      %459 = vmatpush2.bf16.msra.mxu0 0
      %460 = vmatprep.mubr.bf16.mxu0 0
      %461 = vmatmul.mubr.bf16.gmra.mxu0 %v417
      %v462 = vpop.f32.mrf.mxu0
      %v463 = vadd.f32 0.0, %v462
      %v464 = vpop.f32.mrf.mxu0
      %v465 = vpop.f32.mrf.mxu0
      %v466 = vadd.f32 0.0, %v465
      %v467 = vpop.f32.mrf.mxu0
      %468 = vmatprep.mubr.bf16.mxu0 0
      %469 = vmatmul.mubr.bf16.gmra.mxu0 %v420
      %v470 = vpop.f32.mrf.mxu0
      %v471 = vadd.f32 0.0, %v470
      %v472 = vpop.f32.mrf.mxu0
      %v473 = vpop.f32.mrf.mxu0
      %v474 = vadd.f32 0.0, %v473
      %v475 = vpop.f32.mrf.mxu0
      %476 = vmatprep.mubr.bf16.mxu0 0
      %477 = vmatmul.mubr.bf16.gmra.mxu0 %v423
      %v478 = vpop.f32.mrf.mxu0
      %v479 = vadd.f32 0.0, %v478
      %v480 = vpop.f32.mrf.mxu0
      %v481 = vpop.f32.mrf.mxu0
      %v482 = vadd.f32 0.0, %v481
      %v483 = vpop.f32.mrf.mxu0
      %484 = vmatprep.mubr.bf16.mxu0 0
      %485 = vmatmul.mubr.bf16.gmra.mxu0 %v426
      %v486 = vpop.f32.mrf.mxu0
      %v487 = vadd.f32 0.0, %v486
      %v488 = vpop.f32.mrf.mxu0
      %v489 = vpop.f32.mrf.mxu0
      %v490 = vpop.f32.mrf.mxu0
      %491 = vdwg.mxu0
      %v492 = vadd.f32 %v371, %v463
      %v493 = vadd.f32 %v374, %v466
      %v494 = vadd.f32 %v379, %v471
      %v495 = vadd.f32 %v382, %v474
      %v496 = vadd.f32 %v387, %v479
      %v497 = vadd.f32 %v390, %v482
      %v498 = vadd.f32 %v395, %v487
      %v499 = vld [vmem:[%s165 + $0x4] sm:$0xf]
      %v500 = vld [vmem:[%s165 + $0x8] sm:$0xf]
      %v501 = vld [vmem:[%s165 + $0xc] sm:$0xf]
      %v502 = vld [vmem:[%s165 + $0x10] sm:$0xf]
      %v503 = vld [vmem:[%s165 + $0x14] sm:$0xf]
      %v504 = vld [vmem:[%s165 + $0x18] sm:$0xf]
      %v505 = vld [vmem:[%s165 + $0x1c] sm:$0xf]
      %v506 = vld [vmem:[%s165 + $0x20] sm:$0x1]
      %s507 = scalar_lea.vmem %s1, 24
      %v508 = vld [vmem:[%s507] sm:$0xf]
      %v509 = vld [vmem:[%s507 + $0x4] sm:$0xf]
      %v518 = vunpack.c.l.b16 %v499
      %v519 = vunpack.c.l.b16 %v500
      %v520 = vunpack.c.l.b16 %v501
      %v521 = vunpack.c.l.b16 %v502
      %v522 = vunpack.c.l.b16 %v503
      %v523 = vunpack.c.l.b16 %v504
      %v524 = vunpack.c.l.b16 %v505
      %v525 = vunpack.c.l.b16 %v506
      %v526 = vpack.c.b16 %v519, %v518
      %v527 = vpack.c.b16 %v521, %v520
      %v528 = vpack.c.b16 %v523, %v522
      %v529 = vpack.c.b16 %v525, %v524
      %v531 = vshrl.u32 %v526, 16
      %v533 = vshll.u32 %v526, 16
      %v535 = vrot.slane %v533, 1
      %v536 = vor.u32 %v531, %v535
      %v538 = vshll.u32 %v527, 16
      %v540 = vrot.slane %v538, 1
      %v541 = vsel %vm205, %v536, %v540
      %v542 = vshrl.u32 %v527, 16
      %v544 = vor.u32 %v542, %v540
      %v546 = vshll.u32 %v528, 16
      %v548 = vrot.slane %v546, 1
      %v549 = vsel %vm205, %v544, %v548
      %v550 = vshrl.u32 %v528, 16
      %v552 = vor.u32 %v550, %v548
      %v554 = vshll.u32 %v529, 16
      %v556 = vrot.slane %v554, 1
      %v557 = vsel %vm205, %v552, %v556
      %v558 = vshrl.u32 %v529, 16
      %v560 = vor.u32 %v558, %v556
      %v563 = vunpack.c.l.b16 %v508
      %v564 = vunpack.c.l.b16 %v509
      %v565 = vpack.c.b16 %v564, %v563
      %v568 = vsel %vm243, %v541, 0
      %v571 = vsel %vm243, %v549, 0
      %v574 = vsel %vm243, %v557, 0
      %v577 = vsel %vm243, %v560, 0
      %579 = vmatprep.subr.bf16.mxu0 0
      %580 = vmatpush1.bf16.msra.mxu0 0
      %581 = vmatprep.subr.bf16.mxu0 0
      %582 = vmatpush1.bf16.msra.mxu0 0
      %583 = vmatprep.subr.bf16.mxu0 0
      %584 = vmatpush1.bf16.msra.mxu0 0
      %585 = vmatprep.subr.bf16.mxu0 0
      %586 = vmatpush1.bf16.msra.mxu0 0
      %587 = vmatprep.subr.bf16.mxu0 0
      %588 = vmatpush1.bf16.msra.mxu0 0
      %589 = vmatprep.subr.bf16.mxu0 0
      %590 = vmatpush1.bf16.msra.mxu0 0
      %591 = vmatprep.subr.bf16.mxu0 0
      %592 = vmatpush1.bf16.msra.mxu0 0
      %593 = vmatprep.subr.bf16.mxu0 0
      %594 = vmatpush1.bf16.msra.mxu0 %v565
      %595 = vmatprep.subr.bf16.mxu0 0
      %596 = vmatpush2.bf16.msra.mxu0 0
      %597 = vmatprep.subr.bf16.mxu0 0
      %598 = vmatpush2.bf16.msra.mxu0 0
      %599 = vmatprep.subr.bf16.mxu0 0
      %600 = vmatpush2.bf16.msra.mxu0 0
      %601 = vmatprep.subr.bf16.mxu0 0
      %602 = vmatpush2.bf16.msra.mxu0 0
      %603 = vmatprep.subr.bf16.mxu0 0
      %604 = vmatpush2.bf16.msra.mxu0 0
      %605 = vmatprep.subr.bf16.mxu0 0
      %606 = vmatpush2.bf16.msra.mxu0 0
      %607 = vmatprep.subr.bf16.mxu0 0
      %608 = vmatpush2.bf16.msra.mxu0 0
      %609 = vmatprep.subr.bf16.mxu0 0
      %610 = vmatpush2.bf16.msra.mxu0 0
      %611 = vmatprep.mubr.bf16.mxu0 0
      %612 = vmatmul.mubr.bf16.gmra.mxu0 %v568
      %v613 = vpop.f32.mrf.mxu0
      %v614 = vadd.f32 0.0, %v613
      %v615 = vpop.f32.mrf.mxu0
      %v616 = vpop.f32.mrf.mxu0
      %v617 = vadd.f32 0.0, %v616
      %v618 = vpop.f32.mrf.mxu0
      %619 = vmatprep.mubr.bf16.mxu0 0
      %620 = vmatmul.mubr.bf16.gmra.mxu0 %v571
      %v621 = vpop.f32.mrf.mxu0
      %v622 = vadd.f32 0.0, %v621
      %v623 = vpop.f32.mrf.mxu0
      %v624 = vpop.f32.mrf.mxu0
      %v625 = vadd.f32 0.0, %v624
      %v626 = vpop.f32.mrf.mxu0
      %627 = vmatprep.mubr.bf16.mxu0 0
      %628 = vmatmul.mubr.bf16.gmra.mxu0 %v574
      %v629 = vpop.f32.mrf.mxu0
      %v630 = vadd.f32 0.0, %v629
      %v631 = vpop.f32.mrf.mxu0
      %v632 = vpop.f32.mrf.mxu0
      %v633 = vadd.f32 0.0, %v632
      %v634 = vpop.f32.mrf.mxu0
      %635 = vmatprep.mubr.bf16.mxu0 0
      %636 = vmatmul.mubr.bf16.gmra.mxu0 %v577
      %v637 = vpop.f32.mrf.mxu0
      %v638 = vadd.f32 0.0, %v637
      %v639 = vpop.f32.mrf.mxu0
      %v640 = vpop.f32.mrf.mxu0
      %v641 = vpop.f32.mrf.mxu0
      %642 = vdwg.mxu0
      %v643 = vadd.f32 %v492, %v614
      %v644 = vadd.f32 %v493, %v617
      %v645 = vadd.f32 %v494, %v622
      %v646 = vadd.f32 %v495, %v625
      %v647 = vadd.f32 %v496, %v630
      %v648 = vadd.f32 %v497, %v633
      %v649 = vadd.f32 %v498, %v638
      %v650 = vld [vmem:[%s2] sm:$0x1]
      %v652 = vlaneseq
      %v653 = vshrl.u32 %v652, 7
      %v654 = vsub.s32 0, %v653
      %v655 = vrot.slane %v650, %v654
      %v657 = vadd.f32 %v643, %v655
      %v658 = vadd.f32 %v644, %v655
      %v659 = vadd.f32 %v645, %v655
      %v660 = vadd.f32 %v646, %v655
      %v661 = vadd.f32 %v647, %v655
      %v662 = vadd.f32 %v648, %v655
      %v663 = vadd.f32 %v649, %v655
      %vm664 = vcmp.gt.f32.partialorder %v657, 0.0
      %vm665 = vcmp.gt.f32.partialorder %v658, 0.0
      %vm666 = vcmp.gt.f32.partialorder %v659, 0.0
      %vm667 = vcmp.gt.f32.partialorder %v660, 0.0
      %vm668 = vcmp.gt.f32.partialorder %v661, 0.0
      %vm669 = vcmp.gt.f32.partialorder %v662, 0.0
      %vm670 = vcmp.gt.f32.partialorder %v663, 0.0
      %v671 = vmul.f32 %v657, 0.01
      %v672 = vmul.f32 %v658, 0.01
      %v673 = vmul.f32 %v659, 0.01
      %v674 = vmul.f32 %v660, 0.01
      %v675 = vmul.f32 %v661, 0.01
      %v676 = vmul.f32 %v662, 0.01
      %v677 = vmul.f32 %v663, 0.01
      %v678 = vsel %vm664, %v657, %v671
      %v679 = vsel %vm665, %v658, %v672
      %v680 = vsel %vm666, %v659, %v673
      %v681 = vsel %vm667, %v660, %v674
      %v682 = vsel %vm668, %v661, %v675
      %v683 = vsel %vm669, %v662, %v676
      %v684 = vsel %vm670, %v663, %v677
      %685 = vst [vmem:[%s170] sm:$0xff] %v678
      %686 = vst [vmem:[%s170 + $0x8] sm:$0xff] %v679
      %687 = vst [vmem:[%s170 + $0x10] sm:$0xff] %v680
      %688 = vst [vmem:[%s170 + $0x18] sm:$0xff] %v681
      %689 = vst [vmem:[%s170 + $0x20] sm:$0xff] %v682
      %690 = vst [vmem:[%s170 + $0x28] sm:$0xff] %v683
      %691 = vst [vmem:[%s170 + $0x30] sm:$0xff] %v684
      %p692 = scmp.lt.s32.totalorder %s14, 1
      %s693 = scalar_select %p692, %s14, 1
      %s694 = smul.addr %s693, 7
      %s695 = smul.addr %s694, 8
      %s696 = scalar_lea.vmem %s3, %s695
      // Predicated region
      $region33: #{encoder_block_forward.1} parent=31 // pred_check
        %p697 = pneg %p100
      $region34: #{encoder_block_forward.1} parent=31 // pred_check_branch
        %699 = sbr.rel (%p697) target = $region36
      $region35: #{encoder_block_forward.1} parent=31 // pred_region
        _
      $region36: #{encoder_block_forward.1} parent=31 // pred_fallthru
        _
    $region32: #{encoder_block_forward.1} parent=5 // pred_fallthru
      _
    %p700 = scmp.le.s32.totalorder 2, %s9
    // Predicated region
    $region37: #{encoder_block_forward.1} parent=5 // pred_check
      %p701 = pneg %p700
    $region38: #{encoder_block_forward.1} parent=5 // pred_check_branch
      %703 = sbr.rel (%p701) target = $region40
    $region39: #{encoder_block_forward.1} parent=5 // pred_region
      %s704 = ssub.s32 %s9, 2
      // Predicated region
      $region41: #{encoder_block_forward.1} parent=39 // pred_check
        %p705 = pneg %p106
      $region42: #{encoder_block_forward.1} parent=39 // pred_check_branch
        %707 = sbr.rel (%p705) target = $region44
      $region43: #{encoder_block_forward.1} parent=39 // pred_region
        %p708 = scmp.lt.s32.totalorder %s15, 1
        %s709 = scalar_select %p708, %s15, 1
        %s710 = smul.addr %s709, 7
        %s711 = smul.addr %s710, 8
        %s712 = scalar_lea.vmem %s3, %s711
      $region44: #{encoder_block_forward.1} parent=39 // pred_fallthru
        _
    $region40: #{encoder_block_forward.1} parent=5 // pred_fallthru
      _
  $region6: #{encoder_block_forward.1} parent=0 // loop_footer
    %s13 = sadd.s32 1, %s9
  $region7: #{encoder_block_forward.1} parent=0 // loop_footer_branch
    %8 = sbr.rel target = $region3
  $region8: #{encoder_block_forward.1} parent=0 // loop_exit
    _

</llo_original>
